<compile_context>
chip_gen: v5e
topology: v5e:2x2
jax: 0.10.0
libtpu: 0.0.40
codegen_flags: <defaults>
</compile_context>

<pallas_src>
import math
import functools

import jax
import jax.numpy as jnp
from jax.experimental import pallas as pl
from jax.experimental.pallas import tpu as pltpu


def _token_embedding_gather_kernel(ids_ref, table_ref, out_ref, buf_ref, sem,
                                   *, scale, token_block):
    # ids_ref   : (N_pad,) int32 in SMEM (scalar prefetch)
    # table_ref : (V, E) float32, HBM-resident (memory_space=pl.ANY)
    # out_ref   : (token_block, E) float32 VMEM output block
    # buf_ref   : (token_block, E) float32 VMEM gather scratch
    # sem       : DMA semaphore (shape ())
    base = pl.program_id(0) * token_block

    # Issue one row-gather DMA per token: HBM table row -> VMEM scratch row.
    # All token_block copies are in flight concurrently.
    @pl.loop(0, token_block)
    def _issue(t):
        pltpu.make_async_copy(
            table_ref.at[ids_ref[base + t]],   # (E,) row in HBM
            buf_ref.at[t],                     # (E,) row in VMEM
            sem,
        ).start()

    # Drain: one wait per issued copy (all copies have identical byte counts,
    # so a descriptor built with dummy indices drains exactly one of them).
    @pl.loop(0, token_block)
    def _drain(t):
        pltpu.make_async_copy(table_ref.at[0], buf_ref.at[0], sem).wait()

    # Apply the sqrt(emb_size) scale while moving scratch -> output block
    # (single lane-dense VPU op; output block is (token_block, E)).
    out_ref[...] = buf_ref[...] * scale


def token_embedding(tokens, emb_table, *, token_block=256):
    """tokens: (B, S) integer array; emb_table: (V, E) float32 -> (B, S, E) float32."""
    B, S = tokens.shape
    V, E = emb_table.shape
    N = B * S

    # Clamp ids (PyTorch would raise on OOB; here an OOB id would be an
    # unchecked OOB DMA, so clamp instead).
    ids = jnp.clip(tokens.reshape(N).astype(jnp.int32), 0, V - 1)

    # Pad the flattened token stream up to a multiple of token_block
    # (padded slots gather row 0; they are sliced off below).
    n_pad = ((N + token_block - 1) // token_block) * token_block
    if n_pad != N:
        ids = jnp.concatenate([ids, jnp.zeros((n_pad - N,), jnp.int32)])

    scale = float(math.sqrt(E))
    kernel = functools.partial(
        _token_embedding_gather_kernel, scale=scale, token_block=token_block
    )

    out_flat = pl.pallas_call(
        kernel,
        out_shape=jax.ShapeDtypeStruct((n_pad, E), emb_table.dtype),
        grid_spec=pltpu.PrefetchScalarGridSpec(
            num_scalar_prefetch=1,                      # ids -> SMEM
            grid=(n_pad // token_block,),
            in_specs=[
                pl.BlockSpec(memory_space=pl.ANY),      # table stays in HBM
            ],
            out_specs=pl.BlockSpec((token_block, E), lambda i, ids: (i, 0)),
            scratch_shapes=[
                pltpu.VMEM((token_block, E), emb_table.dtype),  # gather buffer
                pltpu.SemaphoreType.DMA(()),
            ],
        ),
        compiler_params=pltpu.CompilerParams(
            dimension_semantics=("parallel",),          # no cross-step state -> megacore-safe
        ),
    )(ids, emb_table)

    return out_flat[:N].reshape(B, S, E)


if __name__ == "__main__":
    # Module hyperparameters (small, consistent with the forward pass).
    vocab_size = 32
    emb_size = 128
    padding_idx = 0

    key = jax.random.PRNGKey(0)
    k_emb, k_tok = jax.random.split(key)

    # nn.Embedding init: N(0, 1), with the padding_idx row zeroed.
    emb_table = jax.random.normal(k_emb, (vocab_size, emb_size), dtype=jnp.float32)
    emb_table = emb_table.at[padding_idx].set(0.0)

    # tokens: (B, S) = (2, 8), include some padding tokens.
    B, S = 2, 8
    tokens = jax.random.randint(k_tok, (B, S), 0, vocab_size, dtype=jnp.int32)
    tokens = tokens.at[0, 0].set(padding_idx)
    tokens = tokens.at[1, -1].set(padding_idx)

    out = token_embedding(tokens, emb_table)
    out = jax.block_until_ready(out)

    # Reference: plain-JAX equivalent of the PyTorch forward.
    ref = jnp.take(emb_table, tokens, axis=0) * math.sqrt(emb_size)
    assert out.shape == (B, S, emb_size)
    assert jnp.allclose(out, ref, atol=1e-5, rtol=1e-5)
    # Padding rows must be exactly zero.
    assert jnp.all(out[0, 0] == 0.0) and jnp.all(out[1, -1] == 0.0)

    print("KERNEL_OK")
</pallas_src>

<mosaic_0001>
module attributes {stable_mosaic.version = 11 : i64} {
  func.func @_token_embedding_gather_kernel(%arg0: i32, %arg1: memref<256xi32, #tpu.memory_space<smem>>, %arg2: memref<32x128xf32, #tpu.memory_space<any>>, %arg3: memref<256x128xf32, #tpu.memory_space<vmem>>, %arg4: memref<256x128xf32, #tpu.memory_space<vmem>>, %arg5: memref<!tpu.dma_semaphore, #tpu.memory_space<semaphore_mem>>) attributes {dimension_semantics = [#tpu.dimension_semantics<parallel>], iteration_bounds = array<i64: 1>, scalar_prefetch = 1 : i64, scratch_operands = 2 : i64, tpu.core_type = #tpu.core_type<tc>, window_params = [{}, {transform_indices = @transform_1, window_bounds = array<i64: 256, 128>}]} {
    %c256_i32 = arith.constant 256 : i32
    %0 = arith.muli %arg0, %c256_i32 : i32
    %c0_i32 = arith.constant 0 : i32
    %c256_i32_0 = arith.constant 256 : i32
    %1 = arith.addi %c0_i32, %c256_i32_0 : i32
    %c1_i32 = arith.constant 1 : i32
    scf.for %arg6 = %c0_i32 to %1 step %c1_i32  : i32 {
      %c1_i32_8 = arith.constant 1 : i32
      %7 = arith.muli %arg6, %c1_i32_8 : i32
      %c0_i32_9 = arith.constant 0 : i32
      %8 = arith.addi %c0_i32_9, %7 : i32
      %9 = arith.addi %0, %8 : i32
      %10 = arith.index_cast %9 : i32 to index
      %11 = memref.load %arg1[%10] : memref<256xi32, #tpu.memory_space<smem>>
      %c0_i32_10 = arith.constant 0 : i32
      %12 = tpu.memref_slice %arg2[%11, %c0_i32_10] : memref<32x128xf32, #tpu.memory_space<any>> -> memref<1x128xf32, #tpu.memory_space<any>>
      %13 = tpu.memref_squeeze %12 : memref<1x128xf32, #tpu.memory_space<any>> -> memref<128xf32, #tpu.memory_space<any>>
      %c0_i32_11 = arith.constant 0 : i32
      %14 = tpu.memref_slice %arg4[%8, %c0_i32_11] : memref<256x128xf32, #tpu.memory_space<vmem>> -> memref<1x128xf32, #tpu.memory_space<vmem>>
      %15 = tpu.memref_squeeze %14 : memref<1x128xf32, #tpu.memory_space<vmem>> -> memref<128xf32, #tpu.memory_space<vmem>>
      tpu.enqueue_dma source(%13 : memref<128xf32, #tpu.memory_space<any>>) target(%15 : memref<128xf32, #tpu.memory_space<vmem>>) target_semaphore(%arg5 : memref<!tpu.dma_semaphore, #tpu.memory_space<semaphore_mem>>)
    }
    %c256_i32_1 = arith.constant 256 : i32
    %c0_i32_2 = arith.constant 0 : i32
    %c256_i32_3 = arith.constant 256 : i32
    %2 = arith.addi %c0_i32_2, %c256_i32_3 : i32
    %c1_i32_4 = arith.constant 1 : i32
    scf.for %arg6 = %c0_i32_2 to %2 step %c1_i32_4  : i32 {
      %c0_i32_8 = arith.constant 0 : i32
      %c0_i32_9 = arith.constant 0 : i32
      %c0_i32_10 = arith.constant 0 : i32
      %7 = tpu.memref_slice %arg2[%c0_i32_8, %c0_i32_10] : memref<32x128xf32, #tpu.memory_space<any>> -> memref<1x128xf32, #tpu.memory_space<any>>
      %8 = tpu.memref_squeeze %7 : memref<1x128xf32, #tpu.memory_space<any>> -> memref<128xf32, #tpu.memory_space<any>>
      %c0_i32_11 = arith.constant 0 : i32
      %9 = tpu.memref_slice %arg4[%c0_i32_9, %c0_i32_11] : memref<256x128xf32, #tpu.memory_space<vmem>> -> memref<1x128xf32, #tpu.memory_space<vmem>>
      %10 = tpu.memref_squeeze %9 : memref<1x128xf32, #tpu.memory_space<vmem>> -> memref<128xf32, #tpu.memory_space<vmem>>
      tpu.wait_dma2 semaphore(%arg5 : memref<!tpu.dma_semaphore, #tpu.memory_space<semaphore_mem>>) src(%8 : memref<128xf32, #tpu.memory_space<any>>) dst(%10 : memref<128xf32, #tpu.memory_space<vmem>>)
    }
    %c0 = arith.constant 0 : index
    %c0_5 = arith.constant 0 : index
    %3 = vector.load %arg4[%c0, %c0_5] : memref<256x128xf32, #tpu.memory_space<vmem>>, vector<256x128xf32>
    %cst = arith.constant 11.3137083 : f32
    %4 = vector.broadcast %cst : f32 to vector<256x128xf32>
    %5 = arith.mulf %3, %4 : vector<256x128xf32>
    %c0_6 = arith.constant 0 : index
    %c0_7 = arith.constant 0 : index
    %6 = vector.load %arg3[%c0_6, %c0_7] : memref<256x128xf32, #tpu.memory_space<vmem>>, vector<256x128xf32>
    tpu.vector_store %arg3[%c0_6, %c0_7], %5 {strides = array<i32>} : memref<256x128xf32, #tpu.memory_space<vmem>>, vector<256x128xf32>,
    return
  }
  func.func @transform_1(%arg0: i32, %arg1: memref<256xi32, #tpu.memory_space<smem>>) -> (i32, i32) {
    %c0_i32 = arith.constant 0 : i32
    %c0_i32_0 = arith.constant 0 : i32
    return %arg0, %c0_i32 : i32, i32
  }
}

</mosaic_0001>

<llo_original>
// kernel: tpu_custom_call.1
$region0: #{tpu_custom_call.1}
  #allocation0 [shape = 'u32[]', space=smem, size = 0x4, offset = 0x4, fixed_abs, tag = 'smem constant byte address 0x4 - core index']
  #allocation1 [shape = 'u32[72,128]{1,0:T(1,128)}', space=vmem, size = 0x9000, scoped, tag = 'internal scratch']
  #allocation2 [shape = 'f32[256,128]{1,0:T(8,128)}', space=vmem, size = 0x20000, scoped, tag = 'scratch operand']
  #allocation3 [shape = 's32[1]{0}', space=sflag, size = 0x4, scoped, tag = 'scratch operand']
  #allocation4 [shape = 's32[1]{0}', space=sflag, size = 0x4, scoped, tag = 'scoped memory for tpu_custom_call.1']
  #allocation5 [shape = 'u8[1024]{0}', space=smem, size = 0x400, scoped, tag = 'prefetched SMEM operand 0']
  #allocation8 [shape = 's32[]', space=sflag, size = 0x4, offset = 0, fixed_abs, tag = 'sflag constant byte address 0x0 - dummy sync flag']
  #allocation9 [shape = 's32[]', space=sflag, size = 0x4, offset = 0, fixed_abs, tag = 'sflag constant byte address 0x0 - dummy sync flag']
  #allocation10 [shape = 'u32[]', space=smem, size = 0x4, offset = 0x44, fixed_abs, tag = 'smem constant byte address 0x44 - assertion arg 0']
  #allocation11 [shape = 'u32[]', space=smem, size = 0x4, offset = 0x48, fixed_abs, tag = 'smem constant byte address 0x48 - assertion arg 1']
  %s0 = inlined_call_operand.hbm [shape: s32[256], index: 0, kind: input, shape index: {}]
  %s1 = inlined_call_operand.hbm [shape: f32[32,128], index: 1, kind: input, shape index: {}]
  %s2 = inlined_call_operand.hbm [shape: f32[256,128], index: 2, kind: output, shape index: {}]
  %s3 = sld [smem:[#allocation0]]
  $region28: #{tpu_custom_call.1} parent=0
    _
  %s5 = ssub.s32 1, %s3
  %s6 = scalar_select 0, %s5, %s3
  %s8 = sshll.u32 %s0, 4
  %s9 = int_to_ptr.hbm [resolvable:$true] %s8
  %11 = dma.hbm_to_smem %s9, 32, [#allocation5], [#allocation4]
  %13 = dma.done [#allocation4], 32
  %14 = sfence
  $region1: #{tpu_custom_call.1} parent=0
    #allocation6 [shape = 'u8[131072]{0}', space=vmem, size = 0x20000, scoped, tag = 'output window, operand 0, single buffered']
    #allocation7 [shape = 's32[1]{0}', space=sflag, size = 0x4, scoped, tag = 'scoped memory for tpu_custom_call.1']
    %15 = vsyncpa [#allocation7], 0
    %s16 = smul.u32 0, 256
    loop: start=0, step=1, limit=256
    $region2: #{tpu_custom_call.1} parent=1 // loop_pre_header
      _
    $region3: #{tpu_custom_call.1} parent=1 // loop_header
      %s18 = sphi 0, %s22
      %p19 = scmp.ge.s32.totalorder %s18, 256
    $region4: #{tpu_custom_call.1} parent=1 // loop_header_branch
      %21 = sbr.rel (%p19) target = $region8
    $region5: #{tpu_custom_call.1} parent=1 // loop_body
      %s23 = sadd.s32 %s16, %s18
      %s24 = sld [smem:[#allocation5 + %s23]]
      %s25 = scalar_lea.hbm %s1, %s24
      %s26 = scalar_lea.vmem [#allocation2], %s18
      // Predicated region
      $region9: #{tpu_custom_call.1} parent=5 // pred_check
        _
      $region10: #{tpu_custom_call.1} parent=5 // pred_check_branch
        %28 = sbr.rel target = $region12
      $region11: #{tpu_custom_call.1} parent=5 // pred_region
        %29 = sst [smem:[#allocation10]] [#allocation9]
        %30 = sst [smem:[#allocation11]] [#allocation8]
      $region12: #{tpu_custom_call.1} parent=5 // pred_fallthru
        _
      %32 = shalt.err (0)
      %s34 = sshll.u32 %s25, 4
      %s35 = int_to_ptr.hbm [resolvable:$true] %s34
      %s36 = sshll.u32 %s26, 4
      %s37 = int_to_ptr.vmem [resolvable:$true] %s36
      %39 = dma.hbm_to_vmem [thread:$0]  %s35, 16, %s37, [#allocation3]
    $region6: #{tpu_custom_call.1} parent=1 // loop_footer
      %s22 = sadd.s32 1, %s18
    $region7: #{tpu_custom_call.1} parent=1 // loop_footer_branch
      %17 = sbr.rel target = $region3
    $region8: #{tpu_custom_call.1} parent=1 // loop_exit
      _
    loop: start=0, step=1, limit=256
    $region13: #{tpu_custom_call.1} parent=1 // loop_pre_header
      _
    $region14: #{tpu_custom_call.1} parent=1 // loop_header
      %s41 = sphi 0, %s45
      %p42 = scmp.ge.s32.totalorder %s41, 256
    $region15: #{tpu_custom_call.1} parent=1 // loop_header_branch
      %44 = sbr.rel (%p42) target = $region19
    $region16: #{tpu_custom_call.1} parent=1 // loop_body
      %47 = dma.done [#allocation3], 16
    $region17: #{tpu_custom_call.1} parent=1 // loop_footer
      %s45 = sadd.s32 1, %s41
    $region18: #{tpu_custom_call.1} parent=1 // loop_footer_branch
      %40 = sbr.rel target = $region14
    $region19: #{tpu_custom_call.1} parent=1 // loop_exit
      _
    %v48 = vld [vmem:[#allocation2] sm:$0xff]
    %v49 = vld [vmem:[#allocation2 + $0x8] sm:$0xff]
    %v50 = vld [vmem:[#allocation2 + $0x10] sm:$0xff]
    %v51 = vld [vmem:[#allocation2 + $0x18] sm:$0xff]
    %v52 = vld [vmem:[#allocation2 + $0x20] sm:$0xff]
    %v53 = vld [vmem:[#allocation2 + $0x28] sm:$0xff]
    %v54 = vld [vmem:[#allocation2 + $0x30] sm:$0xff]
    %v55 = vld [vmem:[#allocation2 + $0x38] sm:$0xff]
    %v56 = vld [vmem:[#allocation2 + $0x40] sm:$0xff]
    %v57 = vld [vmem:[#allocation2 + $0x48] sm:$0xff]
    %v58 = vld [vmem:[#allocation2 + $0x50] sm:$0xff]
    %v59 = vld [vmem:[#allocation2 + $0x58] sm:$0xff]
    %v60 = vld [vmem:[#allocation2 + $0x60] sm:$0xff]
    %v61 = vld [vmem:[#allocation2 + $0x68] sm:$0xff]
    %v62 = vld [vmem:[#allocation2 + $0x70] sm:$0xff]
    %v63 = vld [vmem:[#allocation2 + $0x78] sm:$0xff]
    %v64 = vld [vmem:[#allocation2 + $0x80] sm:$0xff]
    %v65 = vld [vmem:[#allocation2 + $0x88] sm:$0xff]
    %v66 = vld [vmem:[#allocation2 + $0x90] sm:$0xff]
    %v67 = vld [vmem:[#allocation2 + $0x98] sm:$0xff]
    %v68 = vld [vmem:[#allocation2 + $0xa0] sm:$0xff]
    %v69 = vld [vmem:[#allocation2 + $0xa8] sm:$0xff]
    %v70 = vld [vmem:[#allocation2 + $0xb0] sm:$0xff]
    %v71 = vld [vmem:[#allocation2 + $0xb8] sm:$0xff]
    %v72 = vld [vmem:[#allocation2 + $0xc0] sm:$0xff]
    %v73 = vld [vmem:[#allocation2 + $0xc8] sm:$0xff]
    %v74 = vld [vmem:[#allocation2 + $0xd0] sm:$0xff]
    %v75 = vld [vmem:[#allocation2 + $0xd8] sm:$0xff]
    %v76 = vld [vmem:[#allocation2 + $0xe0] sm:$0xff]
    %v77 = vld [vmem:[#allocation2 + $0xe8] sm:$0xff]
    %v78 = vld [vmem:[#allocation2 + $0xf0] sm:$0xff]
    %v79 = vld [vmem:[#allocation2 + $0xf8] sm:$0xff]
    %v80 = vmul.f32 %v48, 11.313708
    %v81 = vmul.f32 %v49, 11.313708
    %v82 = vmul.f32 %v50, 11.313708
    %v83 = vmul.f32 %v51, 11.313708
    %v84 = vmul.f32 %v52, 11.313708
    %v85 = vmul.f32 %v53, 11.313708
    %v86 = vmul.f32 %v54, 11.313708
    %v87 = vmul.f32 %v55, 11.313708
    %v88 = vmul.f32 %v56, 11.313708
    %v89 = vmul.f32 %v57, 11.313708
    %v90 = vmul.f32 %v58, 11.313708
    %v91 = vmul.f32 %v59, 11.313708
    %v92 = vmul.f32 %v60, 11.313708
    %v93 = vmul.f32 %v61, 11.313708
    %v94 = vmul.f32 %v62, 11.313708
    %v95 = vmul.f32 %v63, 11.313708
    %v96 = vmul.f32 %v64, 11.313708
    %v97 = vmul.f32 %v65, 11.313708
    %v98 = vmul.f32 %v66, 11.313708
    %v99 = vmul.f32 %v67, 11.313708
    %v100 = vmul.f32 %v68, 11.313708
    %v101 = vmul.f32 %v69, 11.313708
    %v102 = vmul.f32 %v70, 11.313708
    %v103 = vmul.f32 %v71, 11.313708
    %v104 = vmul.f32 %v72, 11.313708
    %v105 = vmul.f32 %v73, 11.313708
    %v106 = vmul.f32 %v74, 11.313708
    %v107 = vmul.f32 %v75, 11.313708
    %v108 = vmul.f32 %v76, 11.313708
    %v109 = vmul.f32 %v77, 11.313708
    %v110 = vmul.f32 %v78, 11.313708
    %v111 = vmul.f32 %v79, 11.313708
    %112 = vst [vmem:[#allocation6] sm:$0xff] %v80
    %113 = vst [vmem:[#allocation6 + $0x8] sm:$0xff] %v81
    %114 = vst [vmem:[#allocation6 + $0x10] sm:$0xff] %v82
    %115 = vst [vmem:[#allocation6 + $0x18] sm:$0xff] %v83
    %116 = vst [vmem:[#allocation6 + $0x20] sm:$0xff] %v84
    %117 = vst [vmem:[#allocation6 + $0x28] sm:$0xff] %v85
    %118 = vst [vmem:[#allocation6 + $0x30] sm:$0xff] %v86
    %119 = vst [vmem:[#allocation6 + $0x38] sm:$0xff] %v87
    %120 = vst [vmem:[#allocation6 + $0x40] sm:$0xff] %v88
    %121 = vst [vmem:[#allocation6 + $0x48] sm:$0xff] %v89
    %122 = vst [vmem:[#allocation6 + $0x50] sm:$0xff] %v90
    %123 = vst [vmem:[#allocation6 + $0x58] sm:$0xff] %v91
    %124 = vst [vmem:[#allocation6 + $0x60] sm:$0xff] %v92
    %125 = vst [vmem:[#allocation6 + $0x68] sm:$0xff] %v93
    %126 = vst [vmem:[#allocation6 + $0x70] sm:$0xff] %v94
    %127 = vst [vmem:[#allocation6 + $0x78] sm:$0xff] %v95
    %128 = vst [vmem:[#allocation6 + $0x80] sm:$0xff] %v96
    %129 = vst [vmem:[#allocation6 + $0x88] sm:$0xff] %v97
    %130 = vst [vmem:[#allocation6 + $0x90] sm:$0xff] %v98
    %131 = vst [vmem:[#allocation6 + $0x98] sm:$0xff] %v99
    %132 = vst [vmem:[#allocation6 + $0xa0] sm:$0xff] %v100
    %133 = vst [vmem:[#allocation6 + $0xa8] sm:$0xff] %v101
    %134 = vst [vmem:[#allocation6 + $0xb0] sm:$0xff] %v102
    %135 = vst [vmem:[#allocation6 + $0xb8] sm:$0xff] %v103
    %136 = vst [vmem:[#allocation6 + $0xc0] sm:$0xff] %v104
    %137 = vst [vmem:[#allocation6 + $0xc8] sm:$0xff] %v105
    %138 = vst [vmem:[#allocation6 + $0xd0] sm:$0xff] %v106
    %139 = vst [vmem:[#allocation6 + $0xd8] sm:$0xff] %v107
    %140 = vst [vmem:[#allocation6 + $0xe0] sm:$0xff] %v108
    %141 = vst [vmem:[#allocation6 + $0xe8] sm:$0xff] %v109
    %142 = vst [vmem:[#allocation6 + $0xf0] sm:$0xff] %v110
    %143 = vst [vmem:[#allocation6 + $0xf8] sm:$0xff] %v111
    // Predicated region
    $region20: #{tpu_custom_call.1} parent=1 // pred_check
      _
    $region21: #{tpu_custom_call.1} parent=1 // pred_check_branch
      %145 = sbr.rel (0) target = $region23
    $region22: #{tpu_custom_call.1} parent=1 // pred_region
      %147 = vsyncadd [#allocation7], 0
      %s148 = sshll.u32 [#allocation6], 4
      %s149 = int_to_ptr.vmem [resolvable:$true] %s148
      %s150 = sshll.u32 %s2, 4
      %s151 = int_to_ptr.hbm [resolvable:$true] %s150
      %156 = dma.vmem_to_hbm [thread:$0]  %s149, 4096, %s151, [#allocation7], 128, 128, 8
    $region23: #{tpu_custom_call.1} parent=1 // pred_fallthru
      _
    // Predicated region
    $region24: #{tpu_custom_call.1} parent=1 // pred_check
      _
    $region25: #{tpu_custom_call.1} parent=1 // pred_check_branch
      %158 = sbr.rel (0) target = $region27
    $region26: #{tpu_custom_call.1} parent=1 // pred_region
      %160 = dma.done [#allocation7], 4096
    $region27: #{tpu_custom_call.1} parent=1 // pred_fallthru
      _
    %161 = vsyncpa [#allocation7], 1
  %162 = vsyncmov [#allocation3]
  %s163 = vpop.sfrf %162
  %p164 = scmp.eq.s32.totalorder %s163, 0
  %p165 = pneg %p164
  %167 = shalt.err (%p165)

</llo_original>
